<compile_context>
chip_gen: v7x
topology: tpu7x:2x2x1
jax: 0.10.0
libtpu: 0.0.40
codegen_flags: <defaults>
</compile_context>

<pallas_src>
import functools
import math

import jax
import jax.numpy as jnp
from jax.experimental import pallas as pl
from jax.experimental.pallas import tpu as pltpu

MIN_NORM = 1e-15
PROJ_EPS = 4e-3                           # PoincareBall.eps[torch.float32]
_LANES = 128                              # TPU vreg lane width
_TARGET_BLOCK_BYTES = 4 * 1024 * 1024     # ~4 MiB blocks sit on the HBM-roofline plateau
_MAX_ROW_TILE = 4096
_MAX_PACK_WIDTH = 2048                    # cap for lcm-based packing (lanes per slab row)
_VMEM_LIMIT_BYTES = 48 * 1024 * 1024      # above scoped defaults, below v7x 64 MiB physical


def _poincare_scale(u_sq, c):
    """Per-row scale s such that out = u * s == proj(expmap0(u, c), c).

    expmap0 scales u by tanh(scn)/scn with scn = sqrt(c)*||u||, hence
    ||expmap0(u)|| = tanh(scn)/sqrt(c) exactly; proj clips that norm at
    (1 - eps)/sqrt(c).  Both collapse to: s = min(tanh(scn), 1-eps) / scn.
    Exact divide (not approx reciprocal) keeps 1e-5 parity with the reference;
    it only touches per-row scalars so it is cheap.
    """
    sqrt_c = c ** 0.5
    u_norm = jnp.maximum(jnp.sqrt(u_sq), MIN_NORM)
    scn = sqrt_c * u_norm
    return jnp.minimum(jnp.tanh(scn), 1.0 - PROJ_EPS) / scn


def _row_kernel(x_ref, o_ref, *, c):
    """One Poincare row per tile row; reduction over the lane axis (XLU)."""
    u = x_ref[...].astype(jnp.float32)                        # (rt, D)
    u_sq = jnp.sum(u * u, axis=-1, keepdims=True)             # (rt, 1)
    s = _poincare_scale(u_sq, c)                               # (rt, 1)
    o_ref[...] = (u * s).astype(o_ref.dtype)


def _grouped_kernel(sel_ref, selt_ref, x_ref, o_ref, *, c):
    """G original rows packed per slab row (lane-dense loads/stores).

    Segment sums and the per-segment scale broadcast use tiny constant 0/1
    selector matmuls on the MXU (idle otherwise), so no cross-lane XLU reduce
    and (for lcm packing) no masked partial stores.
    """
    u = x_ref[...].astype(jnp.float32)                         # (rt, W)
    u_sq = jnp.dot(u * u, sel_ref[...],                        # (rt, G) segment sums
                   precision=jax.lax.Precision.HIGHEST,
                   preferred_element_type=jnp.float32)
    s = _poincare_scale(u_sq, c)                               # (rt, G)
    s_full = jnp.dot(s, selt_ref[...],                         # (rt, W) broadcast back
                     precision=jax.lax.Precision.HIGHEST,
                     preferred_element_type=jnp.float32)
    o_ref[...] = (u * s_full).astype(o_ref.dtype)


def _pick_row_tile(num_rows, width):
    """Largest row tile (multiple of 16) with ~_TARGET_BLOCK_BYTES of f32 work."""
    rt = _TARGET_BLOCK_BYTES // (4 * max(1, width))
    rt = min(max((rt // 16) * 16, 16), _MAX_ROW_TILE)
    # A block dim equal to the full array dim is always legal, regardless of (8,128).
    return num_rows if num_rows < rt else rt


def _pick_pack_group(n_rows, d):
    """Rows to pack per slab row. Prefers lcm packing (fully unmasked stores)."""
    if d <= 0 or d % _LANES == 0:
        return 1
    # Fully lane-dense: pack enough rows that the slab width is a multiple of 128.
    g_lcm = (d * _LANES) // math.gcd(d, _LANES) // d
    if g_lcm > 1 and g_lcm * d <= _MAX_PACK_WIDTH and n_rows % g_lcm == 0:
        return g_lcm
    # Partially dense fallback: as many whole rows as fit in 128 lanes.
    if d < _LANES:
        g = _LANES // d
        if g > 1 and n_rows % g == 0:
            return g
    return 1


def to_poincare(x, c=1.0):
    """Maps n-dim Euclidean points (last dim) onto the Poincare ball."""
    orig_shape = x.shape
    D = orig_shape[-1]
    x2d = x.reshape(-1, D)
    N = x2d.shape[0]
    c = float(c)

    n_elem = N * D
    cost = pl.CostEstimate(
        flops=4 * n_elem,                                 # square, reduce-add, scale
        transcendentals=N,                                # one tanh per row
        bytes_accessed=2 * n_elem * x.dtype.itemsize,     # streaming read + write
    )
    cparams = pltpu.CompilerParams(
        dimension_semantics=("parallel",),                # lets v7x split the loop over 2 TCs
        vmem_limit_bytes=_VMEM_LIMIT_BYTES,
    )

    G = _pick_pack_group(N, D)

    if G > 1:
        width = G * D
        rows = N // G
        xk = x2d.reshape(rows, width)                     # zero-copy row-major reshape
        rt = _pick_row_tile(rows, width)
        # 0/1 selector: sel[k, g] = 1 iff lane k belongs to segment g (k // D == g)
        sel = (jnp.arange(width)[:, None] // D == jnp.arange(G)[None, :]).astype(jnp.float32)
        selt = sel.T
        out = pl.pallas_call(
            functools.partial(_grouped_kernel, c=c),
            out_shape=jax.ShapeDtypeStruct((rows, width), x.dtype),
            grid_spec=pltpu.PrefetchScalarGridSpec(
                num_scalar_prefetch=0,
                grid=(pl.cdiv(rows, rt),),
                in_specs=[
                    pl.BlockSpec((width, G), lambda i: (0, 0)),   # constant -> stays resident
                    pl.BlockSpec((G, width), lambda i: (0, 0)),   # constant -> stays resident
                    pl.BlockSpec((rt, width), lambda i: (i, 0)),
                ],
                out_specs=pl.BlockSpec((rt, width), lambda i: (i, 0)),
            ),
            compiler_params=cparams,
            cost_estimate=cost,
        )(sel, selt, xk)
        return out.reshape(orig_shape)

    # Row path: any D; fully lane-dense whenever D % 128 == 0 (typical hidden sizes).
    # TODO(synk): for D that is neither packable nor a multiple of 128 (e.g. odd D with
    # N not divisible by the pack factor), stores remain lane-masked; also a single row
    # wider than the VMEM budget would need a lane-tiled two-pass reduction.
    rt = _pick_row_tile(N, D)
    out = pl.pallas_call(
        functools.partial(_row_kernel, c=c),
        out_shape=jax.ShapeDtypeStruct((N, D), x.dtype),
        grid_spec=pltpu.PrefetchScalarGridSpec(
            num_scalar_prefetch=0,
            grid=(pl.cdiv(N, rt),),
            in_specs=[pl.BlockSpec((rt, D), lambda i: (i, 0))],
            out_specs=pl.BlockSpec((rt, D), lambda i: (i, 0)),
        ),
        compiler_params=cparams,
        cost_estimate=cost,
    )(x2d)
    return out.reshape(orig_shape)


def _reference(x, c=1.0):
    """Faithful transcription of PoincareBall.proj(expmap0(proj_tan0(x,c),c),c)."""
    sqrt_c = c ** 0.5
    u = x.astype(jnp.float32)
    u_norm = jnp.maximum(jnp.linalg.norm(u, axis=-1, keepdims=True), MIN_NORM)
    gamma = jnp.tanh(sqrt_c * u_norm) * u / (sqrt_c * u_norm)
    g_norm = jnp.maximum(jnp.linalg.norm(gamma, axis=-1, keepdims=True), MIN_NORM)
    maxnorm = (1.0 - PROJ_EPS) / sqrt_c
    return jnp.where(g_norm > maxnorm, gamma / g_norm * maxnorm, gamma).astype(x.dtype)


def _make_input(key, shape):
    # Per-row scales spanning small to large norms so both proj branches are exercised.
    b, s, h = shape
    row_scale = jnp.linspace(0.05, 3.0, b * s, dtype=jnp.float32).reshape(b, s, 1)
    return jax.random.normal(key, shape, dtype=jnp.float32) * row_scale


if __name__ == "__main__":
    key = jax.random.PRNGKey(0)
    k0, k1, k2, k3 = jax.random.split(key, 4)

    # Primary shape implied by the module's usage: (batch, seq, hidden) = (2, 8, 32)
    # -> grouped lane-dense path (4 rows of 32 packed per 128-lane slab row).
    x = _make_input(k0, (2, 8, 32))
    z = jax.block_until_ready(to_poincare(x, c=1.0))
    ref = _reference(x, c=1.0)
    assert z.shape == x.shape and z.dtype == x.dtype
    assert jnp.allclose(z, ref, atol=1e-5, rtol=1e-5), "mismatch vs reference (grouped D=32)"

    # Row path, already lane-dense (hidden multiple of 128).
    x2 = _make_input(k1, (2, 8, 256))
    z2 = jax.block_until_ready(to_poincare(x2, c=0.5))
    assert jnp.allclose(z2, _reference(x2, c=0.5), atol=1e-5, rtol=1e-5), \
        "mismatch vs reference (row path, D=256)"

    # lcm-packed path: D=48 -> 8 rows per 384-lane slab row, fully unmasked stores.
    x3 = _make_input(k2, (2, 8, 48))
    z3 = jax.block_until_ready(to_poincare(x3, c=2.0))
    assert jnp.allclose(z3, _reference(x3, c=2.0), atol=1e-5, rtol=1e-5), \
        "mismatch vs reference (grouped D=48)"

    # Row-path fallback (D=33: lcm pack needs 128 rows, floor pack needs N%3==0).
    x4 = _make_input(k3, (2, 8, 33))
    z4 = jax.block_until_ready(to_poincare(x4, c=1.0))
    assert jnp.allclose(z4, _reference(x4, c=1.0), atol=1e-5, rtol=1e-5), \
        "mismatch vs reference (row path, D=33)"

    print("KERNEL_OK")
</pallas_src>

<mosaic_0001>
module attributes {stable_mosaic.version = 11 : i64} {
  func.func @_grouped_kernel(%arg0: i32, %arg1: memref<128x4xf32, #tpu.memory_space<vmem>>, %arg2: memref<4x128xf32, #tpu.memory_space<vmem>>, %arg3: memref<4x128xf32, #tpu.memory_space<vmem>>, %arg4: memref<4x128xf32, #tpu.memory_space<vmem>>) attributes {dimension_semantics = [#tpu.dimension_semantics<parallel>], iteration_bounds = array<i64: 1>, scalar_prefetch = 0 : i64, scratch_operands = 0 : i64, tpu.core_type = #tpu.core_type<tc>, window_params = [{pipeline_mode = #tpu.pipeline_mode<synchronous>, transform_indices = @transform_0, window_bounds = array<i64: 128, 4>}, {pipeline_mode = #tpu.pipeline_mode<synchronous>, transform_indices = @transform_1, window_bounds = array<i64: 4, 128>}, {transform_indices = @transform_2, window_bounds = array<i64: 4, 128>}, {transform_indices = @transform_3, window_bounds = array<i64: 4, 128>}]} {
    %c0 = arith.constant 0 : index
    %c0_0 = arith.constant 0 : index
    %0 = vector.load %arg3[%c0, %c0_0] : memref<4x128xf32, #tpu.memory_space<vmem>>, vector<4x128xf32>
    %1 = arith.mulf %0, %0 : vector<4x128xf32>
    %c0_1 = arith.constant 0 : index
    %c0_2 = arith.constant 0 : index
    %2 = vector.load %arg1[%c0_1, %c0_2] : memref<128x4xf32, #tpu.memory_space<vmem>>, vector<128x4xf32>
    %cst = arith.constant dense<0.000000e+00> : vector<4x4xf32>
    %3 = tpu.matmul %1, %2, %cst {dimension_numbers = #tpu.dot_dimension_numbers<[1], [0], [0], [1], [0, 0, 1, 1], [], []>, precision = #tpu.contract_precision<fp32>} : vector<4x128xf32>, vector<128x4xf32>, vector<4x4xf32> -> vector<4x4xf32>
    %4 = math.sqrt %3 : vector<4x4xf32>
    %cst_3 = arith.constant 1.000000e-15 : f32
    %5 = vector.broadcast %cst_3 : f32 to vector<4x4xf32>
    %6 = arith.maximumf %4, %5 : vector<4x4xf32>
    %cst_4 = arith.constant 1.000000e+00 : f32
    %7 = vector.broadcast %cst_4 : f32 to vector<4x4xf32>
    %8 = arith.mulf %7, %6 : vector<4x4xf32>
    %9 = math.tanh %8 : vector<4x4xf32>
    %cst_5 = arith.constant 0.995999991 : f32
    %10 = vector.broadcast %cst_5 : f32 to vector<4x4xf32>
    %11 = arith.minimumf %9, %10 : vector<4x4xf32>
    %12 = arith.divf %11, %8 : vector<4x4xf32>
    %c0_6 = arith.constant 0 : index
    %c0_7 = arith.constant 0 : index
    %13 = vector.load %arg2[%c0_6, %c0_7] : memref<4x128xf32, #tpu.memory_space<vmem>>, vector<4x128xf32>
    %cst_8 = arith.constant dense<0.000000e+00> : vector<4x128xf32>
    %14 = tpu.matmul %12, %13, %cst_8 {dimension_numbers = #tpu.dot_dimension_numbers<[1], [0], [0], [1], [0, 0, 1, 1], [], []>, precision = #tpu.contract_precision<fp32>} : vector<4x4xf32>, vector<4x128xf32>, vector<4x128xf32> -> vector<4x128xf32>
    %15 = arith.mulf %0, %14 : vector<4x128xf32>
    %c0_9 = arith.constant 0 : index
    %c0_10 = arith.constant 0 : index
    %16 = vector.load %arg4[%c0_9, %c0_10] : memref<4x128xf32, #tpu.memory_space<vmem>>, vector<4x128xf32>
    tpu.vector_store %arg4[%c0_9, %c0_10], %15 {strides = array<i32>} : memref<4x128xf32, #tpu.memory_space<vmem>>, vector<4x128xf32>,
    return
  }
  func.func @transform_0(%arg0: i32) -> (i32, i32) {
    %c0_i32 = arith.constant 0 : i32
    %c0_i32_0 = arith.constant 0 : i32
    %c0_i32_1 = arith.constant 0 : i32
    return %c0_i32, %c0_i32_0 : i32, i32
  }
  func.func @transform_1(%arg0: i32) -> (i32, i32) {
    %c0_i32 = arith.constant 0 : i32
    %c0_i32_0 = arith.constant 0 : i32
    %c0_i32_1 = arith.constant 0 : i32
    return %c0_i32, %c0_i32_0 : i32, i32
  }
  func.func @transform_2(%arg0: i32) -> (i32, i32) {
    %c0_i32 = arith.constant 0 : i32
    %c0_i32_0 = arith.constant 0 : i32
    return %arg0, %c0_i32 : i32, i32
  }
  func.func @transform_3(%arg0: i32) -> (i32, i32) {
    %c0_i32 = arith.constant 0 : i32
    %c0_i32_0 = arith.constant 0 : i32
    return %arg0, %c0_i32 : i32, i32
  }
}

</mosaic_0001>

<llo_original>
// kernel: tpu_custom_call.1
$region0: #{tpu_custom_call.1}
  #allocation0 [shape = 'u32[]', space=smem, size = 0x4, offset = 0x4, fixed_abs, tag = 'smem constant byte address 0x4 - core index']
  #allocation1 [shape = 'u32[144,128]{1,0:T(1,128)}', space=vmem, size = 0x12000, scoped, tag = 'internal scratch']
  %s0 = inlined_call_operand.vmem [shape: f32[128,4], index: 0, kind: input, shape index: {}]
  %s1 = inlined_call_operand.vmem [shape: f32[4,128], index: 1, kind: input, shape index: {}]
  %s2 = inlined_call_operand.vmem [shape: f32[4,128], index: 2, kind: input, shape index: {}]
  %s3 = inlined_call_operand.hbm [shape: f32[4,128], index: 3, kind: output, shape index: {}]
  %s4 = sld [smem:[#allocation0]]
  $region22: #{tpu_custom_call.1} parent=0
    _
  %s6 = ssub.s32 1, %s4
  %s7 = scalar_select 0, %s6, %s4
  $region1: #{tpu_custom_call.1} parent=0
    #allocation2 [shape = 'u8[2048]{0}', space=vmem, size = 0x800, scoped, tag = 'output window, operand 0, single buffered']
    #allocation3 [shape = 's32[1]{0}', space=sflag, size = 0x4, scoped, tag = 'scoped memory for tpu_custom_call.1']
    %8 = vsyncpa [#allocation3], 0
    // Predicated region
    $region2: #{tpu_custom_call.1} parent=1 // pred_check
      _
    $region3: #{tpu_custom_call.1} parent=1 // pred_check_branch
      %10 = sbr.rel (0) target = $region5
    $region4: #{tpu_custom_call.1} parent=1 // pred_region
      _
    $region5: #{tpu_custom_call.1} parent=1 // pred_fallthru
      _
    // Predicated region
    $region6: #{tpu_custom_call.1} parent=1 // pred_check
      _
    $region7: #{tpu_custom_call.1} parent=1 // pred_check_branch
      %12 = sbr.rel (0) target = $region9
    $region8: #{tpu_custom_call.1} parent=1 // pred_region
      _
    $region9: #{tpu_custom_call.1} parent=1 // pred_fallthru
      _
    // Predicated region
    $region10: #{tpu_custom_call.1} parent=1 // pred_check
      _
    $region11: #{tpu_custom_call.1} parent=1 // pred_check_branch
      %14 = sbr.rel (0) target = $region13
    $region12: #{tpu_custom_call.1} parent=1 // pred_region
      _
    $region13: #{tpu_custom_call.1} parent=1 // pred_fallthru
      _
    %v15 = vld [vmem:[%s2] sm:$0xf]
    %v16 = vmul.f32 %v15, %v15
    %v17 = vld [vmem:[%s0] sm:$0xff]
    %v18 = vld [vmem:[%s0 + $0x8] sm:$0xff]
    %v19 = vld [vmem:[%s0 + $0x10] sm:$0xff]
    %v20 = vld [vmem:[%s0 + $0x18] sm:$0xff]
    %v21 = vld [vmem:[%s0 + $0x20] sm:$0xff]
    %v22 = vld [vmem:[%s0 + $0x28] sm:$0xff]
    %v23 = vld [vmem:[%s0 + $0x30] sm:$0xff]
    %v24 = vld [vmem:[%s0 + $0x38] sm:$0xff]
    %v25 = vld [vmem:[%s0 + $0x40] sm:$0xff]
    %v26 = vld [vmem:[%s0 + $0x48] sm:$0xff]
    %v27 = vld [vmem:[%s0 + $0x50] sm:$0xff]
    %v28 = vld [vmem:[%s0 + $0x58] sm:$0xff]
    %v29 = vld [vmem:[%s0 + $0x60] sm:$0xff]
    %v30 = vld [vmem:[%s0 + $0x68] sm:$0xff]
    %v31 = vld [vmem:[%s0 + $0x70] sm:$0xff]
    %v32 = vld [vmem:[%s0 + $0x78] sm:$0xff]
    %33 = vmatprep.subr.mxu0 0.0
    %v34 = vand.u32 %v17, 4294901760
    %35 = vmatpush1.msra.mxu0 %v34
    %36 = vmatprep.subr.mxu0 0.0
    %v37 = vand.u32 %v18, 4294901760
    %38 = vmatpush1.msra.mxu0 %v37
    %39 = vmatprep.subr.mxu0 0.0
    %v40 = vand.u32 %v19, 4294901760
    %41 = vmatpush1.msra.mxu0 %v40
    %42 = vmatprep.subr.mxu0 0.0
    %v43 = vand.u32 %v20, 4294901760
    %44 = vmatpush1.msra.mxu0 %v43
    %45 = vmatprep.subr.mxu0 0.0
    %v46 = vand.u32 %v21, 4294901760
    %47 = vmatpush1.msra.mxu0 %v46
    %48 = vmatprep.subr.mxu0 0.0
    %v49 = vand.u32 %v22, 4294901760
    %50 = vmatpush1.msra.mxu0 %v49
    %51 = vmatprep.subr.mxu0 0.0
    %v52 = vand.u32 %v23, 4294901760
    %53 = vmatpush1.msra.mxu0 %v52
    %54 = vmatprep.subr.mxu0 0.0
    %v55 = vand.u32 %v24, 4294901760
    %56 = vmatpush1.msra.mxu0 %v55
    %57 = vmatprep.subr.mxu0 0.0
    %v58 = vand.u32 %v25, 4294901760
    %59 = vmatpush1.msra.mxu0 %v58
    %60 = vmatprep.subr.mxu0 0.0
    %v61 = vand.u32 %v26, 4294901760
    %62 = vmatpush1.msra.mxu0 %v61
    %63 = vmatprep.subr.mxu0 0.0
    %v64 = vand.u32 %v27, 4294901760
    %65 = vmatpush1.msra.mxu0 %v64
    %66 = vmatprep.subr.mxu0 0.0
    %v67 = vand.u32 %v28, 4294901760
    %68 = vmatpush1.msra.mxu0 %v67
    %69 = vmatprep.subr.mxu0 0.0
    %v70 = vand.u32 %v29, 4294901760
    %71 = vmatpush1.msra.mxu0 %v70
    %72 = vmatprep.subr.mxu0 0.0
    %v73 = vand.u32 %v30, 4294901760
    %74 = vmatpush1.msra.mxu0 %v73
    %75 = vmatprep.subr.mxu0 0.0
    %v76 = vand.u32 %v31, 4294901760
    %77 = vmatpush1.msra.mxu0 %v76
    %78 = vmatprep.subr.mxu0 0.0
    %v79 = vand.u32 %v32, 4294901760
    %80 = vmatpush1.msra.mxu0 %v79
    %81 = vmatprep.subr.mxu0 0.0
    %82 = vmatpush1.msra.mxu0 0.0
    %83 = vmatprep.subr.mxu0 0.0
    %84 = vmatpush1.msra.mxu0 0.0
    %85 = vmatprep.subr.mxu0 0.0
    %86 = vmatpush1.msra.mxu0 0.0
    %87 = vmatprep.subr.mxu0 0.0
    %88 = vmatpush1.msra.mxu0 0.0
    %89 = vmatprep.subr.mxu0 0.0
    %90 = vmatpush1.msra.mxu0 0.0
    %91 = vmatprep.subr.mxu0 0.0
    %92 = vmatpush1.msra.mxu0 0.0
    %93 = vmatprep.subr.mxu0 0.0
    %94 = vmatpush1.msra.mxu0 0.0
    %95 = vmatprep.subr.mxu0 0.0
    %96 = vmatpush1.msra.mxu0 0.0
    %97 = vmatprep.subr.mxu0 0.0
    %98 = vmatpush1.msra.mxu0 0.0
    %99 = vmatprep.subr.mxu0 0.0
    %100 = vmatpush1.msra.mxu0 0.0
    %101 = vmatprep.subr.mxu0 0.0
    %102 = vmatpush1.msra.mxu0 0.0
    %103 = vmatprep.subr.mxu0 0.0
    %104 = vmatpush1.msra.mxu0 0.0
    %105 = vmatprep.subr.mxu0 0.0
    %106 = vmatpush1.msra.mxu0 0.0
    %107 = vmatprep.subr.mxu0 0.0
    %108 = vmatpush1.msra.mxu0 0.0
    %109 = vmatprep.subr.mxu0 0.0
    %110 = vmatpush1.msra.mxu0 0.0
    %111 = vmatprep.subr.mxu0 0.0
    %112 = vmatpush1.msra.mxu0 0.0
    %113 = vmatprep.mubr.f32.mxu0 0.0
    %v114 = vand.u32 %v16, 4294901760
    %v115 = vsub.f32 %v16, %v114
    %v116 = vand.u32 %v115, 4294901760
    %v117 = vsub.f32 %v115, %v116
    %v118 = vand.u32 %v117, 4294901760
    %119 = vmatmul.mubr.f32.gmra.mrb[0].mxu0 %v118
    %v120 = vpop.f32.mrb[0].mxu0
    %v121 = vadd.f32 0.0, %v120
    %v122 = vpop.f32.mrb[0].mxu0
    %123 = vdwg.mxu0
    %124 = vmatprep.subr.mxu0 0.0
    %v125 = vand.u32 %v17, 4294901760
    %v126 = vsub.f32 %v17, %v125
    %v127 = vand.u32 %v126, 4294901760
    %v128 = vsub.f32 %v126, %v127
    %v129 = vand.u32 %v128, 4294901760
    %130 = vmatpush1.msra.mxu0 %v129
    %131 = vmatprep.subr.mxu0 0.0
    %v132 = vand.u32 %v18, 4294901760
    %v133 = vsub.f32 %v18, %v132
    %v134 = vand.u32 %v133, 4294901760
    %v135 = vsub.f32 %v133, %v134
    %v136 = vand.u32 %v135, 4294901760
    %137 = vmatpush1.msra.mxu0 %v136
    %138 = vmatprep.subr.mxu0 0.0
    %v139 = vand.u32 %v19, 4294901760
    %v140 = vsub.f32 %v19, %v139
    %v141 = vand.u32 %v140, 4294901760
    %v142 = vsub.f32 %v140, %v141
    %v143 = vand.u32 %v142, 4294901760
    %144 = vmatpush1.msra.mxu0 %v143
    %145 = vmatprep.subr.mxu0 0.0
    %v146 = vand.u32 %v20, 4294901760
    %v147 = vsub.f32 %v20, %v146
    %v148 = vand.u32 %v147, 4294901760
    %v149 = vsub.f32 %v147, %v148
    %v150 = vand.u32 %v149, 4294901760
    %151 = vmatpush1.msra.mxu0 %v150
    %152 = vmatprep.subr.mxu0 0.0
    %v153 = vand.u32 %v21, 4294901760
    %v154 = vsub.f32 %v21, %v153
    %v155 = vand.u32 %v154, 4294901760
    %v156 = vsub.f32 %v154, %v155
    %v157 = vand.u32 %v156, 4294901760
    %158 = vmatpush1.msra.mxu0 %v157
    %159 = vmatprep.subr.mxu0 0.0
    %v160 = vand.u32 %v22, 4294901760
    %v161 = vsub.f32 %v22, %v160
    %v162 = vand.u32 %v161, 4294901760
    %v163 = vsub.f32 %v161, %v162
    %v164 = vand.u32 %v163, 4294901760
    %165 = vmatpush1.msra.mxu0 %v164
    %166 = vmatprep.subr.mxu0 0.0
    %v167 = vand.u32 %v23, 4294901760
    %v168 = vsub.f32 %v23, %v167
    %v169 = vand.u32 %v168, 4294901760
    %v170 = vsub.f32 %v168, %v169
    %v171 = vand.u32 %v170, 4294901760
    %172 = vmatpush1.msra.mxu0 %v171
    %173 = vmatprep.subr.mxu0 0.0
    %v174 = vand.u32 %v24, 4294901760
    %v175 = vsub.f32 %v24, %v174
    %v176 = vand.u32 %v175, 4294901760
    %v177 = vsub.f32 %v175, %v176
    %v178 = vand.u32 %v177, 4294901760
    %179 = vmatpush1.msra.mxu0 %v178
    %180 = vmatprep.subr.mxu0 0.0
    %v181 = vand.u32 %v25, 4294901760
    %v182 = vsub.f32 %v25, %v181
    %v183 = vand.u32 %v182, 4294901760
    %v184 = vsub.f32 %v182, %v183
    %v185 = vand.u32 %v184, 4294901760
    %186 = vmatpush1.msra.mxu0 %v185
    %187 = vmatprep.subr.mxu0 0.0
    %v188 = vand.u32 %v26, 4294901760
    %v189 = vsub.f32 %v26, %v188
    %v190 = vand.u32 %v189, 4294901760
    %v191 = vsub.f32 %v189, %v190
    %v192 = vand.u32 %v191, 4294901760
    %193 = vmatpush1.msra.mxu0 %v192
    %194 = vmatprep.subr.mxu0 0.0
    %v195 = vand.u32 %v27, 4294901760
    %v196 = vsub.f32 %v27, %v195
    %v197 = vand.u32 %v196, 4294901760
    %v198 = vsub.f32 %v196, %v197
    %v199 = vand.u32 %v198, 4294901760
    %200 = vmatpush1.msra.mxu0 %v199
    %201 = vmatprep.subr.mxu0 0.0
    %v202 = vand.u32 %v28, 4294901760
    %v203 = vsub.f32 %v28, %v202
    %v204 = vand.u32 %v203, 4294901760
    %v205 = vsub.f32 %v203, %v204
    %v206 = vand.u32 %v205, 4294901760
    %207 = vmatpush1.msra.mxu0 %v206
    %208 = vmatprep.subr.mxu0 0.0
    %v209 = vand.u32 %v29, 4294901760
    %v210 = vsub.f32 %v29, %v209
    %v211 = vand.u32 %v210, 4294901760
    %v212 = vsub.f32 %v210, %v211
    %v213 = vand.u32 %v212, 4294901760
    %214 = vmatpush1.msra.mxu0 %v213
    %215 = vmatprep.subr.mxu0 0.0
    %v216 = vand.u32 %v30, 4294901760
    %v217 = vsub.f32 %v30, %v216
    %v218 = vand.u32 %v217, 4294901760
    %v219 = vsub.f32 %v217, %v218
    %v220 = vand.u32 %v219, 4294901760
    %221 = vmatpush1.msra.mxu0 %v220
    %222 = vmatprep.subr.mxu0 0.0
    %v223 = vand.u32 %v31, 4294901760
    %v224 = vsub.f32 %v31, %v223
    %v225 = vand.u32 %v224, 4294901760
    %v226 = vsub.f32 %v224, %v225
    %v227 = vand.u32 %v226, 4294901760
    %228 = vmatpush1.msra.mxu0 %v227
    %229 = vmatprep.subr.mxu0 0.0
    %v230 = vand.u32 %v32, 4294901760
    %v231 = vsub.f32 %v32, %v230
    %v232 = vand.u32 %v231, 4294901760
    %v233 = vsub.f32 %v231, %v232
    %v234 = vand.u32 %v233, 4294901760
    %235 = vmatpush1.msra.mxu0 %v234
    %236 = vmatprep.subr.mxu0 0.0
    %237 = vmatpush1.msra.mxu0 0.0
    %238 = vmatprep.subr.mxu0 0.0
    %239 = vmatpush1.msra.mxu0 0.0
    %240 = vmatprep.subr.mxu0 0.0
    %241 = vmatpush1.msra.mxu0 0.0
    %242 = vmatprep.subr.mxu0 0.0
    %243 = vmatpush1.msra.mxu0 0.0
    %244 = vmatprep.subr.mxu0 0.0
    %245 = vmatpush1.msra.mxu0 0.0
    %246 = vmatprep.subr.mxu0 0.0
    %247 = vmatpush1.msra.mxu0 0.0
    %248 = vmatprep.subr.mxu0 0.0
    %249 = vmatpush1.msra.mxu0 0.0
    %250 = vmatprep.subr.mxu0 0.0
    %251 = vmatpush1.msra.mxu0 0.0
    %252 = vmatprep.subr.mxu0 0.0
    %253 = vmatpush1.msra.mxu0 0.0
    %254 = vmatprep.subr.mxu0 0.0
    %255 = vmatpush1.msra.mxu0 0.0
    %256 = vmatprep.subr.mxu0 0.0
    %257 = vmatpush1.msra.mxu0 0.0
    %258 = vmatprep.subr.mxu0 0.0
    %259 = vmatpush1.msra.mxu0 0.0
    %260 = vmatprep.subr.mxu0 0.0
    %261 = vmatpush1.msra.mxu0 0.0
    %262 = vmatprep.subr.mxu0 0.0
    %263 = vmatpush1.msra.mxu0 0.0
    %264 = vmatprep.subr.mxu0 0.0
    %265 = vmatpush1.msra.mxu0 0.0
    %266 = vmatprep.subr.mxu0 0.0
    %267 = vmatpush1.msra.mxu0 0.0
    %268 = vmatprep.mubr.f32.mxu0 0.0
    %v269 = vand.u32 %v16, 4294901760
    %270 = vmatmul.mubr.f32.gmra.mrb[0].mxu0 %v269
    %v271 = vpop.f32.mrb[0].mxu0
    %v272 = vadd.f32 %v121, %v271
    %v273 = vpop.f32.mrb[0].mxu0
    %274 = vdwg.mxu0
    %275 = vmatprep.subr.mxu0 0.0
    %v276 = vand.u32 %v17, 4294901760
    %v277 = vsub.f32 %v17, %v276
    %278 = vmatpush1.msra.mxu0 %v277
    %279 = vmatprep.subr.mxu0 0.0
    %v280 = vand.u32 %v18, 4294901760
    %v281 = vsub.f32 %v18, %v280
    %282 = vmatpush1.msra.mxu0 %v281
    %283 = vmatprep.subr.mxu0 0.0
    %v284 = vand.u32 %v19, 4294901760
    %v285 = vsub.f32 %v19, %v284
    %286 = vmatpush1.msra.mxu0 %v285
    %287 = vmatprep.subr.mxu0 0.0
    %v288 = vand.u32 %v20, 4294901760
    %v289 = vsub.f32 %v20, %v288
    %290 = vmatpush1.msra.mxu0 %v289
    %291 = vmatprep.subr.mxu0 0.0
    %v292 = vand.u32 %v21, 4294901760
    %v293 = vsub.f32 %v21, %v292
    %294 = vmatpush1.msra.mxu0 %v293
    %295 = vmatprep.subr.mxu0 0.0
    %v296 = vand.u32 %v22, 4294901760
    %v297 = vsub.f32 %v22, %v296
    %298 = vmatpush1.msra.mxu0 %v297
    %299 = vmatprep.subr.mxu0 0.0
    %v300 = vand.u32 %v23, 4294901760
    %v301 = vsub.f32 %v23, %v300
    %302 = vmatpush1.msra.mxu0 %v301
    %303 = vmatprep.subr.mxu0 0.0
    %v304 = vand.u32 %v24, 4294901760
    %v305 = vsub.f32 %v24, %v304
    %306 = vmatpush1.msra.mxu0 %v305
    %307 = vmatprep.subr.mxu0 0.0
    %v308 = vand.u32 %v25, 4294901760
    %v309 = vsub.f32 %v25, %v308
    %310 = vmatpush1.msra.mxu0 %v309
    %311 = vmatprep.subr.mxu0 0.0
    %v312 = vand.u32 %v26, 4294901760
    %v313 = vsub.f32 %v26, %v312
    %314 = vmatpush1.msra.mxu0 %v313
    %315 = vmatprep.subr.mxu0 0.0
    %v316 = vand.u32 %v27, 4294901760
    %v317 = vsub.f32 %v27, %v316
    %318 = vmatpush1.msra.mxu0 %v317
    %319 = vmatprep.subr.mxu0 0.0
    %v320 = vand.u32 %v28, 4294901760
    %v321 = vsub.f32 %v28, %v320
    %322 = vmatpush1.msra.mxu0 %v321
    %323 = vmatprep.subr.mxu0 0.0
    %v324 = vand.u32 %v29, 4294901760
    %v325 = vsub.f32 %v29, %v324
    %326 = vmatpush1.msra.mxu0 %v325
    %327 = vmatprep.subr.mxu0 0.0
    %v328 = vand.u32 %v30, 4294901760
    %v329 = vsub.f32 %v30, %v328
    %330 = vmatpush1.msra.mxu0 %v329
    %331 = vmatprep.subr.mxu0 0.0
    %v332 = vand.u32 %v31, 4294901760
    %v333 = vsub.f32 %v31, %v332
    %334 = vmatpush1.msra.mxu0 %v333
    %335 = vmatprep.subr.mxu0 0.0
    %v336 = vand.u32 %v32, 4294901760
    %v337 = vsub.f32 %v32, %v336
    %338 = vmatpush1.msra.mxu0 %v337
    %339 = vmatprep.subr.mxu0 0.0
    %340 = vmatpush1.msra.mxu0 0.0
    %341 = vmatprep.subr.mxu0 0.0
    %342 = vmatpush1.msra.mxu0 0.0
    %343 = vmatprep.subr.mxu0 0.0
    %344 = vmatpush1.msra.mxu0 0.0
    %345 = vmatprep.subr.mxu0 0.0
    %346 = vmatpush1.msra.mxu0 0.0
    %347 = vmatprep.subr.mxu0 0.0
    %348 = vmatpush1.msra.mxu0 0.0
    %349 = vmatprep.subr.mxu0 0.0
    %350 = vmatpush1.msra.mxu0 0.0
    %351 = vmatprep.subr.mxu0 0.0
    %352 = vmatpush1.msra.mxu0 0.0
    %353 = vmatprep.subr.mxu0 0.0
    %354 = vmatpush1.msra.mxu0 0.0
    %355 = vmatprep.subr.mxu0 0.0
    %356 = vmatpush1.msra.mxu0 0.0
    %357 = vmatprep.subr.mxu0 0.0
    %358 = vmatpush1.msra.mxu0 0.0
    %359 = vmatprep.subr.mxu0 0.0
    %360 = vmatpush1.msra.mxu0 0.0
    %361 = vmatprep.subr.mxu0 0.0
    %362 = vmatpush1.msra.mxu0 0.0
    %363 = vmatprep.subr.mxu0 0.0
    %364 = vmatpush1.msra.mxu0 0.0
    %365 = vmatprep.subr.mxu0 0.0
    %366 = vmatpush1.msra.mxu0 0.0
    %367 = vmatprep.subr.mxu0 0.0
    %368 = vmatpush1.msra.mxu0 0.0
    %369 = vmatprep.subr.mxu0 0.0
    %370 = vmatpush1.msra.mxu0 0.0
    %371 = vmatprep.mubr.f32.mxu0 0.0
    %v372 = vand.u32 %v16, 4294901760
    %v373 = vsub.f32 %v16, %v372
    %374 = vmatmul.mubr.f32.gmra.mrb[0].mxu0 %v373
    %v375 = vpop.f32.mrb[0].mxu0
    %v376 = vadd.f32 %v272, %v375
    %v377 = vpop.f32.mrb[0].mxu0
    %378 = vdwg.mxu0
    %379 = vmatprep.subr.mxu0 0.0
    %v380 = vand.u32 %v17, 4294901760
    %381 = vmatpush1.msra.mxu0 %v380
    %382 = vmatprep.subr.mxu0 0.0
    %v383 = vand.u32 %v18, 4294901760
    %384 = vmatpush1.msra.mxu0 %v383
    %385 = vmatprep.subr.mxu0 0.0
    %v386 = vand.u32 %v19, 4294901760
    %387 = vmatpush1.msra.mxu0 %v386
    %388 = vmatprep.subr.mxu0 0.0
    %v389 = vand.u32 %v20, 4294901760
    %390 = vmatpush1.msra.mxu0 %v389
    %391 = vmatprep.subr.mxu0 0.0
    %v392 = vand.u32 %v21, 4294901760
    %393 = vmatpush1.msra.mxu0 %v392
    %394 = vmatprep.subr.mxu0 0.0
    %v395 = vand.u32 %v22, 4294901760
    %396 = vmatpush1.msra.mxu0 %v395
    %397 = vmatprep.subr.mxu0 0.0
    %v398 = vand.u32 %v23, 4294901760
    %399 = vmatpush1.msra.mxu0 %v398
    %400 = vmatprep.subr.mxu0 0.0
    %v401 = vand.u32 %v24, 4294901760
    %402 = vmatpush1.msra.mxu0 %v401
    %403 = vmatprep.subr.mxu0 0.0
    %v404 = vand.u32 %v25, 4294901760
    %405 = vmatpush1.msra.mxu0 %v404
    %406 = vmatprep.subr.mxu0 0.0
    %v407 = vand.u32 %v26, 4294901760
    %408 = vmatpush1.msra.mxu0 %v407
    %409 = vmatprep.subr.mxu0 0.0
    %v410 = vand.u32 %v27, 4294901760
    %411 = vmatpush1.msra.mxu0 %v410
    %412 = vmatprep.subr.mxu0 0.0
    %v413 = vand.u32 %v28, 4294901760
    %414 = vmatpush1.msra.mxu0 %v413
    %415 = vmatprep.subr.mxu0 0.0
    %v416 = vand.u32 %v29, 4294901760
    %417 = vmatpush1.msra.mxu0 %v416
    %418 = vmatprep.subr.mxu0 0.0
    %v419 = vand.u32 %v30, 4294901760
    %420 = vmatpush1.msra.mxu0 %v419
    %421 = vmatprep.subr.mxu0 0.0
    %v422 = vand.u32 %v31, 4294901760
    %423 = vmatpush1.msra.mxu0 %v422
    %424 = vmatprep.subr.mxu0 0.0
    %v425 = vand.u32 %v32, 4294901760
    %426 = vmatpush1.msra.mxu0 %v425
    %427 = vmatprep.subr.mxu0 0.0
    %428 = vmatpush1.msra.mxu0 0.0
    %429 = vmatprep.subr.mxu0 0.0
    %430 = vmatpush1.msra.mxu0 0.0
    %431 = vmatprep.subr.mxu0 0.0
    %432 = vmatpush1.msra.mxu0 0.0
    %433 = vmatprep.subr.mxu0 0.0
    %434 = vmatpush1.msra.mxu0 0.0
    %435 = vmatprep.subr.mxu0 0.0
    %436 = vmatpush1.msra.mxu0 0.0
    %437 = vmatprep.subr.mxu0 0.0
    %438 = vmatpush1.msra.mxu0 0.0
    %439 = vmatprep.subr.mxu0 0.0
    %440 = vmatpush1.msra.mxu0 0.0
    %441 = vmatprep.subr.mxu0 0.0
    %442 = vmatpush1.msra.mxu0 0.0
    %443 = vmatprep.subr.mxu0 0.0
    %444 = vmatpush1.msra.mxu0 0.0
    %445 = vmatprep.subr.mxu0 0.0
    %446 = vmatpush1.msra.mxu0 0.0
    %447 = vmatprep.subr.mxu0 0.0
    %448 = vmatpush1.msra.mxu0 0.0
    %449 = vmatprep.subr.mxu0 0.0
    %450 = vmatpush1.msra.mxu0 0.0
    %451 = vmatprep.subr.mxu0 0.0
    %452 = vmatpush1.msra.mxu0 0.0
    %453 = vmatprep.subr.mxu0 0.0
    %454 = vmatpush1.msra.mxu0 0.0
    %455 = vmatprep.subr.mxu0 0.0
    %456 = vmatpush1.msra.mxu0 0.0
    %457 = vmatprep.subr.mxu0 0.0
    %458 = vmatpush1.msra.mxu0 0.0
    %459 = vmatprep.mubr.f32.mxu0 0.0
    %v460 = vand.u32 %v16, 4294901760
    %v461 = vsub.f32 %v16, %v460
    %v462 = vand.u32 %v461, 4294901760
    %463 = vmatmul.mubr.f32.gmra.mrb[0].mxu0 %v462
    %v464 = vpop.f32.mrb[0].mxu0
    %v465 = vadd.f32 %v376, %v464
    %v466 = vpop.f32.mrb[0].mxu0
    %467 = vdwg.mxu0
    %468 = vmatprep.subr.mxu0 0.0
    %v469 = vand.u32 %v17, 4294901760
    %v470 = vsub.f32 %v17, %v469
    %v471 = vand.u32 %v470, 4294901760
    %472 = vmatpush1.msra.mxu0 %v471
    %473 = vmatprep.subr.mxu0 0.0
    %v474 = vand.u32 %v18, 4294901760
    %v475 = vsub.f32 %v18, %v474
    %v476 = vand.u32 %v475, 4294901760
    %477 = vmatpush1.msra.mxu0 %v476
    %478 = vmatprep.subr.mxu0 0.0
    %v479 = vand.u32 %v19, 4294901760
    %v480 = vsub.f32 %v19, %v479
    %v481 = vand.u32 %v480, 4294901760
    %482 = vmatpush1.msra.mxu0 %v481
    %483 = vmatprep.subr.mxu0 0.0
    %v484 = vand.u32 %v20, 4294901760
    %v485 = vsub.f32 %v20, %v484
    %v486 = vand.u32 %v485, 4294901760
    %487 = vmatpush1.msra.mxu0 %v486
    %488 = vmatprep.subr.mxu0 0.0
    %v489 = vand.u32 %v21, 4294901760
    %v490 = vsub.f32 %v21, %v489
    %v491 = vand.u32 %v490, 4294901760
    %492 = vmatpush1.msra.mxu0 %v491
    %493 = vmatprep.subr.mxu0 0.0
    %v494 = vand.u32 %v22, 4294901760
    %v495 = vsub.f32 %v22, %v494
    %v496 = vand.u32 %v495, 4294901760
    %497 = vmatpush1.msra.mxu0 %v496
    %498 = vmatprep.subr.mxu0 0.0
    %v499 = vand.u32 %v23, 4294901760
    %v500 = vsub.f32 %v23, %v499
    %v501 = vand.u32 %v500, 4294901760
    %502 = vmatpush1.msra.mxu0 %v501
    %503 = vmatprep.subr.mxu0 0.0
    %v504 = vand.u32 %v24, 4294901760
    %v505 = vsub.f32 %v24, %v504
    %v506 = vand.u32 %v505, 4294901760
    %507 = vmatpush1.msra.mxu0 %v506
    %508 = vmatprep.subr.mxu0 0.0
    %v509 = vand.u32 %v25, 4294901760
    %v510 = vsub.f32 %v25, %v509
    %v511 = vand.u32 %v510, 4294901760
    %512 = vmatpush1.msra.mxu0 %v511
    %513 = vmatprep.subr.mxu0 0.0
    %v514 = vand.u32 %v26, 4294901760
    %v515 = vsub.f32 %v26, %v514
    %v516 = vand.u32 %v515, 4294901760
    %517 = vmatpush1.msra.mxu0 %v516
    %518 = vmatprep.subr.mxu0 0.0
    %v519 = vand.u32 %v27, 4294901760
    %v520 = vsub.f32 %v27, %v519
    %v521 = vand.u32 %v520, 4294901760
    %522 = vmatpush1.msra.mxu0 %v521
    %523 = vmatprep.subr.mxu0 0.0
    %v524 = vand.u32 %v28, 4294901760
    %v525 = vsub.f32 %v28, %v524
    %v526 = vand.u32 %v525, 4294901760
    %527 = vmatpush1.msra.mxu0 %v526
    %528 = vmatprep.subr.mxu0 0.0
    %v529 = vand.u32 %v29, 4294901760
    %v530 = vsub.f32 %v29, %v529
    %v531 = vand.u32 %v530, 4294901760
    %532 = vmatpush1.msra.mxu0 %v531
    %533 = vmatprep.subr.mxu0 0.0
    %v534 = vand.u32 %v30, 4294901760
    %v535 = vsub.f32 %v30, %v534
    %v536 = vand.u32 %v535, 4294901760
    %537 = vmatpush1.msra.mxu0 %v536
    %538 = vmatprep.subr.mxu0 0.0
    %v539 = vand.u32 %v31, 4294901760
    %v540 = vsub.f32 %v31, %v539
    %v541 = vand.u32 %v540, 4294901760
    %542 = vmatpush1.msra.mxu0 %v541
    %543 = vmatprep.subr.mxu0 0.0
    %v544 = vand.u32 %v32, 4294901760
    %v545 = vsub.f32 %v32, %v544
    %v546 = vand.u32 %v545, 4294901760
    %547 = vmatpush1.msra.mxu0 %v546
    %548 = vmatprep.subr.mxu0 0.0
    %549 = vmatpush1.msra.mxu0 0.0
    %550 = vmatprep.subr.mxu0 0.0
    %551 = vmatpush1.msra.mxu0 0.0
    %552 = vmatprep.subr.mxu0 0.0
    %553 = vmatpush1.msra.mxu0 0.0
    %554 = vmatprep.subr.mxu0 0.0
    %555 = vmatpush1.msra.mxu0 0.0
    %556 = vmatprep.subr.mxu0 0.0
    %557 = vmatpush1.msra.mxu0 0.0
    %558 = vmatprep.subr.mxu0 0.0
    %559 = vmatpush1.msra.mxu0 0.0
    %560 = vmatprep.subr.mxu0 0.0
    %561 = vmatpush1.msra.mxu0 0.0
    %562 = vmatprep.subr.mxu0 0.0
    %563 = vmatpush1.msra.mxu0 0.0
    %564 = vmatprep.subr.mxu0 0.0
    %565 = vmatpush1.msra.mxu0 0.0
    %566 = vmatprep.subr.mxu0 0.0
    %567 = vmatpush1.msra.mxu0 0.0
    %568 = vmatprep.subr.mxu0 0.0
    %569 = vmatpush1.msra.mxu0 0.0
    %570 = vmatprep.subr.mxu0 0.0
    %571 = vmatpush1.msra.mxu0 0.0
    %572 = vmatprep.subr.mxu0 0.0
    %573 = vmatpush1.msra.mxu0 0.0
    %574 = vmatprep.subr.mxu0 0.0
    %575 = vmatpush1.msra.mxu0 0.0
    %576 = vmatprep.subr.mxu0 0.0
    %577 = vmatpush1.msra.mxu0 0.0
    %578 = vmatprep.subr.mxu0 0.0
    %579 = vmatpush1.msra.mxu0 0.0
    %580 = vmatprep.mubr.f32.mxu0 0.0
    %v581 = vand.u32 %v16, 4294901760
    %582 = vmatmul.mubr.f32.gmra.mrb[0].mxu0 %v581
    %v583 = vpop.f32.mrb[0].mxu0
    %v584 = vadd.f32 %v465, %v583
    %v585 = vpop.f32.mrb[0].mxu0
    %586 = vdwg.mxu0
    %587 = vmatprep.subr.mxu0 0.0
    %v588 = vand.u32 %v17, 4294901760
    %589 = vmatpush1.msra.mxu0 %v588
    %590 = vmatprep.subr.mxu0 0.0
    %v591 = vand.u32 %v18, 4294901760
    %592 = vmatpush1.msra.mxu0 %v591
    %593 = vmatprep.subr.mxu0 0.0
    %v594 = vand.u32 %v19, 4294901760
    %595 = vmatpush1.msra.mxu0 %v594
    %596 = vmatprep.subr.mxu0 0.0
    %v597 = vand.u32 %v20, 4294901760
    %598 = vmatpush1.msra.mxu0 %v597
    %599 = vmatprep.subr.mxu0 0.0
    %v600 = vand.u32 %v21, 4294901760
    %601 = vmatpush1.msra.mxu0 %v600
    %602 = vmatprep.subr.mxu0 0.0
    %v603 = vand.u32 %v22, 4294901760
    %604 = vmatpush1.msra.mxu0 %v603
    %605 = vmatprep.subr.mxu0 0.0
    %v606 = vand.u32 %v23, 4294901760
    %607 = vmatpush1.msra.mxu0 %v606
    %608 = vmatprep.subr.mxu0 0.0
    %v609 = vand.u32 %v24, 4294901760
    %610 = vmatpush1.msra.mxu0 %v609
    %611 = vmatprep.subr.mxu0 0.0
    %v612 = vand.u32 %v25, 4294901760
    %613 = vmatpush1.msra.mxu0 %v612
    %614 = vmatprep.subr.mxu0 0.0
    %v615 = vand.u32 %v26, 4294901760
    %616 = vmatpush1.msra.mxu0 %v615
    %617 = vmatprep.subr.mxu0 0.0
    %v618 = vand.u32 %v27, 4294901760
    %619 = vmatpush1.msra.mxu0 %v618
    %620 = vmatprep.subr.mxu0 0.0
    %v621 = vand.u32 %v28, 4294901760
    %622 = vmatpush1.msra.mxu0 %v621
    %623 = vmatprep.subr.mxu0 0.0
    %v624 = vand.u32 %v29, 4294901760
    %625 = vmatpush1.msra.mxu0 %v624
    %626 = vmatprep.subr.mxu0 0.0
    %v627 = vand.u32 %v30, 4294901760
    %628 = vmatpush1.msra.mxu0 %v627
    %629 = vmatprep.subr.mxu0 0.0
    %v630 = vand.u32 %v31, 4294901760
    %631 = vmatpush1.msra.mxu0 %v630
    %632 = vmatprep.subr.mxu0 0.0
    %v633 = vand.u32 %v32, 4294901760
    %634 = vmatpush1.msra.mxu0 %v633
    %635 = vmatprep.subr.mxu0 0.0
    %636 = vmatpush1.msra.mxu0 0.0
    %637 = vmatprep.subr.mxu0 0.0
    %638 = vmatpush1.msra.mxu0 0.0
    %639 = vmatprep.subr.mxu0 0.0
    %640 = vmatpush1.msra.mxu0 0.0
    %641 = vmatprep.subr.mxu0 0.0
    %642 = vmatpush1.msra.mxu0 0.0
    %643 = vmatprep.subr.mxu0 0.0
    %644 = vmatpush1.msra.mxu0 0.0
    %645 = vmatprep.subr.mxu0 0.0
    %646 = vmatpush1.msra.mxu0 0.0
    %647 = vmatprep.subr.mxu0 0.0
    %648 = vmatpush1.msra.mxu0 0.0
    %649 = vmatprep.subr.mxu0 0.0
    %650 = vmatpush1.msra.mxu0 0.0
    %651 = vmatprep.subr.mxu0 0.0
    %652 = vmatpush1.msra.mxu0 0.0
    %653 = vmatprep.subr.mxu0 0.0
    %654 = vmatpush1.msra.mxu0 0.0
    %655 = vmatprep.subr.mxu0 0.0
    %656 = vmatpush1.msra.mxu0 0.0
    %657 = vmatprep.subr.mxu0 0.0
    %658 = vmatpush1.msra.mxu0 0.0
    %659 = vmatprep.subr.mxu0 0.0
    %660 = vmatpush1.msra.mxu0 0.0
    %661 = vmatprep.subr.mxu0 0.0
    %662 = vmatpush1.msra.mxu0 0.0
    %663 = vmatprep.subr.mxu0 0.0
    %664 = vmatpush1.msra.mxu0 0.0
    %665 = vmatprep.subr.mxu0 0.0
    %666 = vmatpush1.msra.mxu0 0.0
    %667 = vmatprep.mubr.f32.mxu0 0.0
    %v668 = vand.u32 %v16, 4294901760
    %669 = vmatmul.mubr.f32.gmra.mrb[0].mxu0 %v668
    %v670 = vpop.f32.mrb[0].mxu0
    %v671 = vadd.f32 %v584, %v670
    %v672 = vpop.f32.mrb[0].mxu0
    %673 = vdwg.mxu0
    %v674 = vrsqrt.pop %v671
    %v675 = vmul.f32 %v671, %v674
    %vm676 = vcmp.eq.f32.partialorder %v671, inf
    %v677 = vsel %vm676, %v671, %v675
    %vm678 = vcmp.eq.f32.partialorder %v671, 0.0
    %v679 = vand.u32 %v671, 2147483648
    %v680 = vsel %vm678, %v679, %v677
    %v681 = vmax.f32 %v680, 1e-15
    %v682 = vtanh.pop %v681
    %v683 = vmin.f32 %v682, 0.996
    %v684 = vrcp.pop %v681
    %v685 = vmul.f32 %v683, %v684
    %v686 = vld [vmem:[%s1] sm:$0xf]
    %vm687 = vcmask 31744
    %v689 = vsel %vm687, %v685, 0
    %vm691 = vcmask 1043456
    %v693 = vsel %vm691, %v686, 0
    %695 = vmatprep.subr.mxu0 0.0
    %v696 = vand.u32 %v693, 4294901760
    %697 = vmatpush1.msra.mxu0 %v696
    %698 = vmatprep.subr.mxu0 0.0
    %699 = vmatpush1.msra.mxu0 0.0
    %700 = vmatprep.subr.mxu0 0.0
    %701 = vmatpush1.msra.mxu0 0.0
    %702 = vmatprep.subr.mxu0 0.0
    %703 = vmatpush1.msra.mxu0 0.0
    %704 = vmatprep.subr.mxu0 0.0
    %705 = vmatpush1.msra.mxu0 0.0
    %706 = vmatprep.subr.mxu0 0.0
    %707 = vmatpush1.msra.mxu0 0.0
    %708 = vmatprep.subr.mxu0 0.0
    %709 = vmatpush1.msra.mxu0 0.0
    %710 = vmatprep.subr.mxu0 0.0
    %711 = vmatpush1.msra.mxu0 0.0
    %712 = vmatprep.subr.mxu0 0.0
    %713 = vmatpush1.msra.mxu0 0.0
    %714 = vmatprep.subr.mxu0 0.0
    %715 = vmatpush1.msra.mxu0 0.0
    %716 = vmatprep.subr.mxu0 0.0
    %717 = vmatpush1.msra.mxu0 0.0
    %718 = vmatprep.subr.mxu0 0.0
    %719 = vmatpush1.msra.mxu0 0.0
    %720 = vmatprep.subr.mxu0 0.0
    %721 = vmatpush1.msra.mxu0 0.0
    %722 = vmatprep.subr.mxu0 0.0
    %723 = vmatpush1.msra.mxu0 0.0
    %724 = vmatprep.subr.mxu0 0.0
    %725 = vmatpush1.msra.mxu0 0.0
    %726 = vmatprep.subr.mxu0 0.0
    %727 = vmatpush1.msra.mxu0 0.0
    %728 = vmatprep.subr.mxu0 0.0
    %729 = vmatpush1.msra.mxu0 0.0
    %730 = vmatprep.subr.mxu0 0.0
    %731 = vmatpush1.msra.mxu0 0.0
    %732 = vmatprep.subr.mxu0 0.0
    %733 = vmatpush1.msra.mxu0 0.0
    %734 = vmatprep.subr.mxu0 0.0
    %735 = vmatpush1.msra.mxu0 0.0
    %736 = vmatprep.subr.mxu0 0.0
    %737 = vmatpush1.msra.mxu0 0.0
    %738 = vmatprep.subr.mxu0 0.0
    %739 = vmatpush1.msra.mxu0 0.0
    %740 = vmatprep.subr.mxu0 0.0
    %741 = vmatpush1.msra.mxu0 0.0
    %742 = vmatprep.subr.mxu0 0.0
    %743 = vmatpush1.msra.mxu0 0.0
    %744 = vmatprep.subr.mxu0 0.0
    %745 = vmatpush1.msra.mxu0 0.0
    %746 = vmatprep.subr.mxu0 0.0
    %747 = vmatpush1.msra.mxu0 0.0
    %748 = vmatprep.subr.mxu0 0.0
    %749 = vmatpush1.msra.mxu0 0.0
    %750 = vmatprep.subr.mxu0 0.0
    %751 = vmatpush1.msra.mxu0 0.0
    %752 = vmatprep.subr.mxu0 0.0
    %753 = vmatpush1.msra.mxu0 0.0
    %754 = vmatprep.subr.mxu0 0.0
    %755 = vmatpush1.msra.mxu0 0.0
    %756 = vmatprep.subr.mxu0 0.0
    %757 = vmatpush1.msra.mxu0 0.0
    %758 = vmatprep.subr.mxu0 0.0
    %759 = vmatpush1.msra.mxu0 0.0
    %760 = vmatprep.mubr.f32.mxu0 0.0
    %v761 = vand.u32 %v689, 4294901760
    %v762 = vsub.f32 %v689, %v761
    %v763 = vand.u32 %v762, 4294901760
    %v764 = vsub.f32 %v762, %v763
    %v765 = vand.u32 %v764, 4294901760
    %766 = vmatmul.mubr.f32.gmra.mrb[0].mxu0 %v765
    %v767 = vpop.f32.mrb[0].mxu0
    %v768 = vadd.f32 0.0, %v767
    %v769 = vpop.f32.mrb[0].mxu0
    %770 = vdwg.mxu0
    %771 = vmatprep.subr.mxu0 0.0
    %v772 = vand.u32 %v693, 4294901760
    %v773 = vsub.f32 %v693, %v772
    %v774 = vand.u32 %v773, 4294901760
    %v775 = vsub.f32 %v773, %v774
    %v776 = vand.u32 %v775, 4294901760
    %777 = vmatpush1.msra.mxu0 %v776
    %778 = vmatprep.subr.mxu0 0.0
    %779 = vmatpush1.msra.mxu0 0.0
    %780 = vmatprep.subr.mxu0 0.0
    %781 = vmatpush1.msra.mxu0 0.0
    %782 = vmatprep.subr.mxu0 0.0
    %783 = vmatpush1.msra.mxu0 0.0
    %784 = vmatprep.subr.mxu0 0.0
    %785 = vmatpush1.msra.mxu0 0.0
    %786 = vmatprep.subr.mxu0 0.0
    %787 = vmatpush1.msra.mxu0 0.0
    %788 = vmatprep.subr.mxu0 0.0
    %789 = vmatpush1.msra.mxu0 0.0
    %790 = vmatprep.subr.mxu0 0.0
    %791 = vmatpush1.msra.mxu0 0.0
    %792 = vmatprep.subr.mxu0 0.0
    %793 = vmatpush1.msra.mxu0 0.0
    %794 = vmatprep.subr.mxu0 0.0
    %795 = vmatpush1.msra.mxu0 0.0
    %796 = vmatprep.subr.mxu0 0.0
    %797 = vmatpush1.msra.mxu0 0.0
    %798 = vmatprep.subr.mxu0 0.0
    %799 = vmatpush1.msra.mxu0 0.0
    %800 = vmatprep.subr.mxu0 0.0
    %801 = vmatpush1.msra.mxu0 0.0
    %802 = vmatprep.subr.mxu0 0.0
    %803 = vmatpush1.msra.mxu0 0.0
    %804 = vmatprep.subr.mxu0 0.0
    %805 = vmatpush1.msra.mxu0 0.0
    %806 = vmatprep.subr.mxu0 0.0
    %807 = vmatpush1.msra.mxu0 0.0
    %808 = vmatprep.subr.mxu0 0.0
    %809 = vmatpush1.msra.mxu0 0.0
    %810 = vmatprep.subr.mxu0 0.0
    %811 = vmatpush1.msra.mxu0 0.0
    %812 = vmatprep.subr.mxu0 0.0
    %813 = vmatpush1.msra.mxu0 0.0
    %814 = vmatprep.subr.mxu0 0.0
    %815 = vmatpush1.msra.mxu0 0.0
    %816 = vmatprep.subr.mxu0 0.0
    %817 = vmatpush1.msra.mxu0 0.0
    %818 = vmatprep.subr.mxu0 0.0
    %819 = vmatpush1.msra.mxu0 0.0
    %820 = vmatprep.subr.mxu0 0.0
    %821 = vmatpush1.msra.mxu0 0.0
    %822 = vmatprep.subr.mxu0 0.0
    %823 = vmatpush1.msra.mxu0 0.0
    %824 = vmatprep.subr.mxu0 0.0
    %825 = vmatpush1.msra.mxu0 0.0
    %826 = vmatprep.subr.mxu0 0.0
    %827 = vmatpush1.msra.mxu0 0.0
    %828 = vmatprep.subr.mxu0 0.0
    %829 = vmatpush1.msra.mxu0 0.0
    %830 = vmatprep.subr.mxu0 0.0
    %831 = vmatpush1.msra.mxu0 0.0
    %832 = vmatprep.subr.mxu0 0.0
    %833 = vmatpush1.msra.mxu0 0.0
    %834 = vmatprep.subr.mxu0 0.0
    %835 = vmatpush1.msra.mxu0 0.0
    %836 = vmatprep.subr.mxu0 0.0
    %837 = vmatpush1.msra.mxu0 0.0
    %838 = vmatprep.subr.mxu0 0.0
    %839 = vmatpush1.msra.mxu0 0.0
    %840 = vmatprep.mubr.f32.mxu0 0.0
    %v841 = vand.u32 %v689, 4294901760
    %842 = vmatmul.mubr.f32.gmra.mrb[0].mxu0 %v841
    %v843 = vpop.f32.mrb[0].mxu0
    %v844 = vadd.f32 %v768, %v843
    %v845 = vpop.f32.mrb[0].mxu0
    %846 = vdwg.mxu0
    %847 = vmatprep.subr.mxu0 0.0
    %v848 = vand.u32 %v693, 4294901760
    %v849 = vsub.f32 %v693, %v848
    %850 = vmatpush1.msra.mxu0 %v849
    %851 = vmatprep.subr.mxu0 0.0
    %852 = vmatpush1.msra.mxu0 0.0
    %853 = vmatprep.subr.mxu0 0.0
    %854 = vmatpush1.msra.mxu0 0.0
    %855 = vmatprep.subr.mxu0 0.0
    %856 = vmatpush1.msra.mxu0 0.0
    %857 = vmatprep.subr.mxu0 0.0
    %858 = vmatpush1.msra.mxu0 0.0
    %859 = vmatprep.subr.mxu0 0.0
    %860 = vmatpush1.msra.mxu0 0.0
    %861 = vmatprep.subr.mxu0 0.0
    %862 = vmatpush1.msra.mxu0 0.0
    %863 = vmatprep.subr.mxu0 0.0
    %864 = vmatpush1.msra.mxu0 0.0
    %865 = vmatprep.subr.mxu0 0.0
    %866 = vmatpush1.msra.mxu0 0.0
    %867 = vmatprep.subr.mxu0 0.0
    %868 = vmatpush1.msra.mxu0 0.0
    %869 = vmatprep.subr.mxu0 0.0
    %870 = vmatpush1.msra.mxu0 0.0
    %871 = vmatprep.subr.mxu0 0.0
    %872 = vmatpush1.msra.mxu0 0.0
    %873 = vmatprep.subr.mxu0 0.0
    %874 = vmatpush1.msra.mxu0 0.0
    %875 = vmatprep.subr.mxu0 0.0
    %876 = vmatpush1.msra.mxu0 0.0
    %877 = vmatprep.subr.mxu0 0.0
    %878 = vmatpush1.msra.mxu0 0.0
    %879 = vmatprep.subr.mxu0 0.0
    %880 = vmatpush1.msra.mxu0 0.0
    %881 = vmatprep.subr.mxu0 0.0
    %882 = vmatpush1.msra.mxu0 0.0
    %883 = vmatprep.subr.mxu0 0.0
    %884 = vmatpush1.msra.mxu0 0.0
    %885 = vmatprep.subr.mxu0 0.0
    %886 = vmatpush1.msra.mxu0 0.0
    %887 = vmatprep.subr.mxu0 0.0
    %888 = vmatpush1.msra.mxu0 0.0
    %889 = vmatprep.subr.mxu0 0.0
    %890 = vmatpush1.msra.mxu0 0.0
    %891 = vmatprep.subr.mxu0 0.0
    %892 = vmatpush1.msra.mxu0 0.0
    %893 = vmatprep.subr.mxu0 0.0
    %894 = vmatpush1.msra.mxu0 0.0
    %895 = vmatprep.subr.mxu0 0.0
    %896 = vmatpush1.msra.mxu0 0.0
    %897 = vmatprep.subr.mxu0 0.0
    %898 = vmatpush1.msra.mxu0 0.0
    %899 = vmatprep.subr.mxu0 0.0
    %900 = vmatpush1.msra.mxu0 0.0
    %901 = vmatprep.subr.mxu0 0.0
    %902 = vmatpush1.msra.mxu0 0.0
    %903 = vmatprep.subr.mxu0 0.0
    %904 = vmatpush1.msra.mxu0 0.0
    %905 = vmatprep.subr.mxu0 0.0
    %906 = vmatpush1.msra.mxu0 0.0
    %907 = vmatprep.subr.mxu0 0.0
    %908 = vmatpush1.msra.mxu0 0.0
    %909 = vmatprep.subr.mxu0 0.0
    %910 = vmatpush1.msra.mxu0 0.0
    %911 = vmatprep.subr.mxu0 0.0
    %912 = vmatpush1.msra.mxu0 0.0
    %913 = vmatprep.mubr.f32.mxu0 0.0
    %v914 = vand.u32 %v689, 4294901760
    %v915 = vsub.f32 %v689, %v914
    %916 = vmatmul.mubr.f32.gmra.mrb[0].mxu0 %v915
    %v917 = vpop.f32.mrb[0].mxu0
    %v918 = vadd.f32 %v844, %v917
    %v919 = vpop.f32.mrb[0].mxu0
    %920 = vdwg.mxu0
    %921 = vmatprep.subr.mxu0 0.0
    %v922 = vand.u32 %v693, 4294901760
    %923 = vmatpush1.msra.mxu0 %v922
    %924 = vmatprep.subr.mxu0 0.0
    %925 = vmatpush1.msra.mxu0 0.0
    %926 = vmatprep.subr.mxu0 0.0
    %927 = vmatpush1.msra.mxu0 0.0
    %928 = vmatprep.subr.mxu0 0.0
    %929 = vmatpush1.msra.mxu0 0.0
    %930 = vmatprep.subr.mxu0 0.0
    %931 = vmatpush1.msra.mxu0 0.0
    %932 = vmatprep.subr.mxu0 0.0
    %933 = vmatpush1.msra.mxu0 0.0
    %934 = vmatprep.subr.mxu0 0.0
    %935 = vmatpush1.msra.mxu0 0.0
    %936 = vmatprep.subr.mxu0 0.0
    %937 = vmatpush1.msra.mxu0 0.0
    %938 = vmatprep.subr.mxu0 0.0
    %939 = vmatpush1.msra.mxu0 0.0
    %940 = vmatprep.subr.mxu0 0.0
    %941 = vmatpush1.msra.mxu0 0.0
    %942 = vmatprep.subr.mxu0 0.0
    %943 = vmatpush1.msra.mxu0 0.0
    %944 = vmatprep.subr.mxu0 0.0
    %945 = vmatpush1.msra.mxu0 0.0
    %946 = vmatprep.subr.mxu0 0.0
    %947 = vmatpush1.msra.mxu0 0.0
    %948 = vmatprep.subr.mxu0 0.0
    %949 = vmatpush1.msra.mxu0 0.0
    %950 = vmatprep.subr.mxu0 0.0
    %951 = vmatpush1.msra.mxu0 0.0
    %952 = vmatprep.subr.mxu0 0.0
    %953 = vmatpush1.msra.mxu0 0.0
    %954 = vmatprep.subr.mxu0 0.0
    %955 = vmatpush1.msra.mxu0 0.0
    %956 = vmatprep.subr.mxu0 0.0
    %957 = vmatpush1.msra.mxu0 0.0
    %958 = vmatprep.subr.mxu0 0.0
    %959 = vmatpush1.msra.mxu0 0.0
    %960 = vmatprep.subr.mxu0 0.0
    %961 = vmatpush1.msra.mxu0 0.0
    %962 = vmatprep.subr.mxu0 0.0
    %963 = vmatpush1.msra.mxu0 0.0
    %964 = vmatprep.subr.mxu0 0.0
    %965 = vmatpush1.msra.mxu0 0.0
    %966 = vmatprep.subr.mxu0 0.0
    %967 = vmatpush1.msra.mxu0 0.0
    %968 = vmatprep.subr.mxu0 0.0
    %969 = vmatpush1.msra.mxu0 0.0
    %970 = vmatprep.subr.mxu0 0.0
    %971 = vmatpush1.msra.mxu0 0.0
    %972 = vmatprep.subr.mxu0 0.0
    %973 = vmatpush1.msra.mxu0 0.0
    %974 = vmatprep.subr.mxu0 0.0
    %975 = vmatpush1.msra.mxu0 0.0
    %976 = vmatprep.subr.mxu0 0.0
    %977 = vmatpush1.msra.mxu0 0.0
    %978 = vmatprep.subr.mxu0 0.0
    %979 = vmatpush1.msra.mxu0 0.0
    %980 = vmatprep.subr.mxu0 0.0
    %981 = vmatpush1.msra.mxu0 0.0
    %982 = vmatprep.subr.mxu0 0.0
    %983 = vmatpush1.msra.mxu0 0.0
    %984 = vmatprep.subr.mxu0 0.0
    %985 = vmatpush1.msra.mxu0 0.0
    %986 = vmatprep.mubr.f32.mxu0 0.0
    %v987 = vand.u32 %v689, 4294901760
    %v988 = vsub.f32 %v689, %v987
    %v989 = vand.u32 %v988, 4294901760
    %990 = vmatmul.mubr.f32.gmra.mrb[0].mxu0 %v989
    %v991 = vpop.f32.mrb[0].mxu0
    %v992 = vadd.f32 %v918, %v991
    %v993 = vpop.f32.mrb[0].mxu0
    %994 = vdwg.mxu0
    %995 = vmatprep.subr.mxu0 0.0
    %v996 = vand.u32 %v693, 4294901760
    %v997 = vsub.f32 %v693, %v996
    %v998 = vand.u32 %v997, 4294901760
    %999 = vmatpush1.msra.mxu0 %v998
    %1000 = vmatprep.subr.mxu0 0.0
    %1001 = vmatpush1.msra.mxu0 0.0
    %1002 = vmatprep.subr.mxu0 0.0
    %1003 = vmatpush1.msra.mxu0 0.0
    %1004 = vmatprep.subr.mxu0 0.0
    %1005 = vmatpush1.msra.mxu0 0.0
    %1006 = vmatprep.subr.mxu0 0.0
    %1007 = vmatpush1.msra.mxu0 0.0
    %1008 = vmatprep.subr.mxu0 0.0
    %1009 = vmatpush1.msra.mxu0 0.0
    %1010 = vmatprep.subr.mxu0 0.0
    %1011 = vmatpush1.msra.mxu0 0.0
    %1012 = vmatprep.subr.mxu0 0.0
    %1013 = vmatpush1.msra.mxu0 0.0
    %1014 = vmatprep.subr.mxu0 0.0
    %1015 = vmatpush1.msra.mxu0 0.0
    %1016 = vmatprep.subr.mxu0 0.0
    %1017 = vmatpush1.msra.mxu0 0.0
    %1018 = vmatprep.subr.mxu0 0.0
    %1019 = vmatpush1.msra.mxu0 0.0
    %1020 = vmatprep.subr.mxu0 0.0
    %1021 = vmatpush1.msra.mxu0 0.0
    %1022 = vmatprep.subr.mxu0 0.0
    %1023 = vmatpush1.msra.mxu0 0.0
    %1024 = vmatprep.subr.mxu0 0.0
    %1025 = vmatpush1.msra.mxu0 0.0
    %1026 = vmatprep.subr.mxu0 0.0
    %1027 = vmatpush1.msra.mxu0 0.0
    %1028 = vmatprep.subr.mxu0 0.0
    %1029 = vmatpush1.msra.mxu0 0.0
    %1030 = vmatprep.subr.mxu0 0.0
    %1031 = vmatpush1.msra.mxu0 0.0
    %1032 = vmatprep.subr.mxu0 0.0
    %1033 = vmatpush1.msra.mxu0 0.0
    %1034 = vmatprep.subr.mxu0 0.0
    %1035 = vmatpush1.msra.mxu0 0.0
    %1036 = vmatprep.subr.mxu0 0.0
    %1037 = vmatpush1.msra.mxu0 0.0
    %1038 = vmatprep.subr.mxu0 0.0
    %1039 = vmatpush1.msra.mxu0 0.0
    %1040 = vmatprep.subr.mxu0 0.0
    %1041 = vmatpush1.msra.mxu0 0.0
    %1042 = vmatprep.subr.mxu0 0.0
    %1043 = vmatpush1.msra.mxu0 0.0
    %1044 = vmatprep.subr.mxu0 0.0
    %1045 = vmatpush1.msra.mxu0 0.0
    %1046 = vmatprep.subr.mxu0 0.0
    %1047 = vmatpush1.msra.mxu0 0.0
    %1048 = vmatprep.subr.mxu0 0.0
    %1049 = vmatpush1.msra.mxu0 0.0
    %1050 = vmatprep.subr.mxu0 0.0
    %1051 = vmatpush1.msra.mxu0 0.0
    %1052 = vmatprep.subr.mxu0 0.0
    %1053 = vmatpush1.msra.mxu0 0.0
    %1054 = vmatprep.subr.mxu0 0.0
    %1055 = vmatpush1.msra.mxu0 0.0
    %1056 = vmatprep.subr.mxu0 0.0
    %1057 = vmatpush1.msra.mxu0 0.0
    %1058 = vmatprep.subr.mxu0 0.0
    %1059 = vmatpush1.msra.mxu0 0.0
    %1060 = vmatprep.subr.mxu0 0.0
    %1061 = vmatpush1.msra.mxu0 0.0
    %1062 = vmatprep.mubr.f32.mxu0 0.0
    %v1063 = vand.u32 %v689, 4294901760
    %1064 = vmatmul.mubr.f32.gmra.mrb[0].mxu0 %v1063
    %v1065 = vpop.f32.mrb[0].mxu0
    %v1066 = vadd.f32 %v992, %v1065
    %v1067 = vpop.f32.mrb[0].mxu0
    %1068 = vdwg.mxu0
    %1069 = vmatprep.subr.mxu0 0.0
    %v1070 = vand.u32 %v693, 4294901760
    %1071 = vmatpush1.msra.mxu0 %v1070
    %1072 = vmatprep.subr.mxu0 0.0
    %1073 = vmatpush1.msra.mxu0 0.0
    %1074 = vmatprep.subr.mxu0 0.0
    %1075 = vmatpush1.msra.mxu0 0.0
    %1076 = vmatprep.subr.mxu0 0.0
    %1077 = vmatpush1.msra.mxu0 0.0
    %1078 = vmatprep.subr.mxu0 0.0
    %1079 = vmatpush1.msra.mxu0 0.0
    %1080 = vmatprep.subr.mxu0 0.0
    %1081 = vmatpush1.msra.mxu0 0.0
    %1082 = vmatprep.subr.mxu0 0.0
    %1083 = vmatpush1.msra.mxu0 0.0
    %1084 = vmatprep.subr.mxu0 0.0
    %1085 = vmatpush1.msra.mxu0 0.0
    %1086 = vmatprep.subr.mxu0 0.0
    %1087 = vmatpush1.msra.mxu0 0.0
    %1088 = vmatprep.subr.mxu0 0.0
    %1089 = vmatpush1.msra.mxu0 0.0
    %1090 = vmatprep.subr.mxu0 0.0
    %1091 = vmatpush1.msra.mxu0 0.0
    %1092 = vmatprep.subr.mxu0 0.0
    %1093 = vmatpush1.msra.mxu0 0.0
    %1094 = vmatprep.subr.mxu0 0.0
    %1095 = vmatpush1.msra.mxu0 0.0
    %1096 = vmatprep.subr.mxu0 0.0
    %1097 = vmatpush1.msra.mxu0 0.0
    %1098 = vmatprep.subr.mxu0 0.0
    %1099 = vmatpush1.msra.mxu0 0.0
    %1100 = vmatprep.subr.mxu0 0.0
    %1101 = vmatpush1.msra.mxu0 0.0
    %1102 = vmatprep.subr.mxu0 0.0
    %1103 = vmatpush1.msra.mxu0 0.0
    %1104 = vmatprep.subr.mxu0 0.0
    %1105 = vmatpush1.msra.mxu0 0.0
    %1106 = vmatprep.subr.mxu0 0.0
    %1107 = vmatpush1.msra.mxu0 0.0
    %1108 = vmatprep.subr.mxu0 0.0
    %1109 = vmatpush1.msra.mxu0 0.0
    %1110 = vmatprep.subr.mxu0 0.0
    %1111 = vmatpush1.msra.mxu0 0.0
    %1112 = vmatprep.subr.mxu0 0.0
    %1113 = vmatpush1.msra.mxu0 0.0
    %1114 = vmatprep.subr.mxu0 0.0
    %1115 = vmatpush1.msra.mxu0 0.0
    %1116 = vmatprep.subr.mxu0 0.0
    %1117 = vmatpush1.msra.mxu0 0.0
    %1118 = vmatprep.subr.mxu0 0.0
    %1119 = vmatpush1.msra.mxu0 0.0
    %1120 = vmatprep.subr.mxu0 0.0
    %1121 = vmatpush1.msra.mxu0 0.0
    %1122 = vmatprep.subr.mxu0 0.0
    %1123 = vmatpush1.msra.mxu0 0.0
    %1124 = vmatprep.subr.mxu0 0.0
    %1125 = vmatpush1.msra.mxu0 0.0
    %1126 = vmatprep.subr.mxu0 0.0
    %1127 = vmatpush1.msra.mxu0 0.0
    %1128 = vmatprep.subr.mxu0 0.0
    %1129 = vmatpush1.msra.mxu0 0.0
    %1130 = vmatprep.subr.mxu0 0.0
    %1131 = vmatpush1.msra.mxu0 0.0
    %1132 = vmatprep.subr.mxu0 0.0
    %1133 = vmatpush1.msra.mxu0 0.0
    %1134 = vmatprep.mubr.f32.mxu0 0.0
    %v1135 = vand.u32 %v689, 4294901760
    %1136 = vmatmul.mubr.f32.gmra.mrb[0].mxu0 %v1135
    %v1137 = vpop.f32.mrb[0].mxu0
    %v1138 = vadd.f32 %v1066, %v1137
    %v1139 = vpop.f32.mrb[0].mxu0
    %1140 = vdwg.mxu0
    %v1141 = vmul.f32 %v15, %v1138
    %1142 = vst [vmem:[#allocation2] sm:$0xf] %v1141
    // Predicated region
    $region14: #{tpu_custom_call.1} parent=1 // pred_check
      _
    $region15: #{tpu_custom_call.1} parent=1 // pred_check_branch
      %1144 = sbr.rel (0) target = $region17
    $region16: #{tpu_custom_call.1} parent=1 // pred_region
      %s1146 = ssub.s32 64, 64
      %1147 = vsyncadd [#allocation3], %s1146
      %s1149 = sshll.u32 [#allocation2], 4
      %s1150 = int_to_ptr.vmem [resolvable:$true] %s1149
      %1152 = dma.vmem_to_hbm [thread:$0]  %s1150, 64, %s3, [#allocation3]
    $region17: #{tpu_custom_call.1} parent=1 // pred_fallthru
      _
    // Predicated region
    $region18: #{tpu_custom_call.1} parent=1 // pred_check
      _
    $region19: #{tpu_custom_call.1} parent=1 // pred_check_branch
      %1154 = sbr.rel (0) target = $region21
    $region20: #{tpu_custom_call.1} parent=1 // pred_region
      %1155 = dma.done [#allocation3], 64
    $region21: #{tpu_custom_call.1} parent=1 // pred_fallthru
      _
    %1156 = vsyncpa [#allocation3], 1

</llo_original>
